<compile_context>
chip_gen: v7x
topology: tpu7x:2x2x1
jax: 0.10.0
libtpu: 0.0.40
codegen_flags: <defaults>
</compile_context>

<pallas_src>
import functools

import jax
import jax.numpy as jnp
from jax.experimental import pallas as pl
from jax.experimental.pallas import tpu as pltpu

_MIB = 1024 * 1024
# Conservative count of live (TB, C)-sized f32/i32 temporaries inside the kernel
# (upcast copy, shifted, exp, iota, compare/select results) — used only for tile sizing.
_N_F32_TEMPS = 6


def _vmem_capacity_bytes() -> int:
    """Per-TensorCore VMEM capacity; conservative (64 MiB = v7x) if the query fails."""
    try:
        cap = int(pltpu.get_tpu_info().vmem_capacity_bytes)
    except Exception:  # any failure -> conservative default that is safe on all gens
        cap = 64 * _MIB
    return max(cap, 16 * _MIB)


def _sublane(itemsize: int) -> int:
    # bf16 packs 2 rows per sublane -> keep row tiles multiples of 16; f32 -> 8.
    return 16 if itemsize == 2 else 8


def _choose_tile_rows(batch: int, num_classes: int, itemsize: int, vmem_cap: int) -> int:
    sub = _sublane(itemsize)
    if batch <= sub:
        return batch  # single full-extent block — always layout-legal
    # Explicit footprint model: 2x double-buffered native logits tile + ~6 live f32 (TB,C)
    # temporaries + small per-row columns, against ~1/3 of VMEM (limit is set to ~5/8).
    bytes_per_row = num_classes * (2 * itemsize + 4 * _N_F32_TEMPS) + 64
    tb = (vmem_cap // 3) // max(bytes_per_row, 1)
    # Keep >=4 grid steps for large batches (feeds both v7x TensorCores, keeps the
    # prefetch/compute/writeback pipeline busy) without dropping below ~256-row tiles.
    if batch >= 4 * 256:
        tb = min(tb, -(-batch // 4))
    tb = min(tb, 8192, batch)
    tb = max(sub, (tb // sub) * sub)
    return tb
    # TODO(synk): for LLM-sized vocabularies (C*itemsize per row >~ few hundred KiB) add a
    # second "arbitrary" grid axis over classes with online logsumexp / running-argmax
    # scratch; for tiny C (C < 128 and 128 % C == 0) pack 128//C rows per lane group.


def _sanitize_tile_rows(tile_rows: int, batch: int, itemsize: int) -> int:
    sub = _sublane(itemsize)
    if batch <= sub:
        return batch
    tb = max(sub, min(int(tile_rows), batch))
    return (tb // sub) * sub


def _make_kernel(batch: int, num_classes: int, tile_rows: int, use_mask: bool):
    """One batch tile: per-tile masked-NLL partial sum + per-row argmax.

    logits_ref : (TB, C) bf16/f32 VMEM (native dtype; upcast to f32 in-kernel)
    target_ref : (TB, 1) i32      VMEM
    mask_ref   : (TB, 1) f32      VMEM (only when use_mask; 1.0 -> row counted)
    loss_ref   : (1, 1)  f32      VMEM (partial sum of masked per-row CE for this tile)
    pred_ref   : (TB, 1) i32      VMEM (argmax over classes, first occurrence)
    """

    def kernel(*refs):
        if use_mask:
            logits_ref, target_ref, mask_ref, loss_ref, pred_ref = refs
        else:
            logits_ref, target_ref, loss_ref, pred_ref = refs

        logits = logits_ref[...].astype(jnp.float32)        # upcast on the VMEM tile
        tb, c = logits.shape

        # Numerically-stable pieces; `shifted` is computed once, reused by exp + gather.
        row_max = jnp.max(logits, axis=1, keepdims=True)                     # (TB, 1)
        shifted = logits - row_max                                           # (TB, C)
        lse = jnp.log(jnp.sum(jnp.exp(shifted), axis=1, keepdims=True))      # (TB, 1)

        class_ids = jax.lax.broadcasted_iota(jnp.int32, (tb, c), 1)          # (TB, C) i32
        tgt = target_ref[...]                                                # (TB, 1) i32
        # TODO(synk): F.cross_entropy's ignore_index=-100 is not implemented; out-of-range
        # targets contribute a 0 target-logit instead of being excluded / raising.
        tgt_shifted = jnp.sum(jnp.where(class_ids == tgt, shifted, 0.0),
                              axis=1, keepdims=True)                         # (TB, 1)
        nll = lse - tgt_shifted                                              # (TB, 1)

        # Row validity: the last (partial) tile reads garbage past row `batch`; select via
        # where (never multiply) so inf/NaN garbage cannot poison the partial sum.
        row_ids = (pl.program_id(0) * tile_rows
                   + jax.lax.broadcasted_iota(jnp.int32, (tb, 1), 0))        # (TB, 1) i32
        valid = row_ids < batch
        if use_mask:
            valid = jnp.logical_and(valid, mask_ref[...] > 0.0)
        loss_ref[...] = jnp.sum(jnp.where(valid, nll, 0.0), keepdims=True)   # (1, 1)

        # argmax fused with row_max: smallest int32 class index where shifted == 0.
        pred_ref[...] = jnp.min(
            jnp.where(shifted == 0.0, class_ids, num_classes),
            axis=1, keepdims=True)                                           # (TB, 1) i32

    return kernel


def _ce_pallas(inputs, batch, num_classes, tile_rows, use_mask, vmem_limit):
    num_tiles = pl.cdiv(batch, tile_rows)
    in_specs = [
        pl.BlockSpec((tile_rows, num_classes), lambda i: (i, 0)),  # logits (double-buffered)
        pl.BlockSpec((tile_rows, 1), lambda i: (i, 0)),            # target column
    ]
    if use_mask:
        in_specs.append(pl.BlockSpec((tile_rows, 1), lambda i: (i, 0)))  # known-row mask
    return pl.pallas_call(
        _make_kernel(batch, num_classes, tile_rows, use_mask),
        grid=(num_tiles,),
        out_shape=(
            jax.ShapeDtypeStruct((num_tiles, 1), jnp.float32),     # per-tile NLL partial sum
            jax.ShapeDtypeStruct((batch, 1), jnp.int32),           # per-row argmax
        ),
        in_specs=in_specs,
        out_specs=(
            pl.BlockSpec((1, 1), lambda i: (i, 0)),
            pl.BlockSpec((tile_rows, 1), lambda i: (i, 0)),
        ),
        compiler_params=pltpu.CompilerParams(
            dimension_semantics=("parallel",),    # batch tiles are independent (megacore)
            vmem_limit_bytes=int(vmem_limit),
        ),
    )(*inputs)


@functools.partial(jax.jit, static_argnames=("is_incremental", "tile_rows"))
def student_incremental_ce_loss(logits, target, incremental_mask, is_incremental,
                                lambda_fuzzy=1.0, tile_rows=None):
    """JAX/Pallas equivalent of StudentIncrementalCrossEntropyLoss.forward.

    logits           : (B, C) float32 or bfloat16
    target           : (B,)   integer class ids
    incremental_mask : (B,)   bool
    is_incremental   : python bool (static)
    Returns (total_loss scalar f32, pred_labels (B,) int32).
    """
    B, C = logits.shape
    # Keep bf16 logits in bf16 through the HBM->VMEM DMA (halves traffic); anything else
    # is promoted to f32 in the wrapper.
    if logits.dtype not in (jnp.dtype(jnp.bfloat16), jnp.dtype(jnp.float32)):
        logits = logits.astype(jnp.float32)
    itemsize = jnp.dtype(logits.dtype).itemsize

    vmem_cap = _vmem_capacity_bytes()
    if tile_rows is None:
        tb = _choose_tile_rows(B, C, itemsize, vmem_cap)
    else:
        tb = _sanitize_tile_rows(tile_rows, B, itemsize)

    target_col = target.astype(jnp.int32).reshape(B, 1)
    use_mask = bool(is_incremental)
    inputs = [logits, target_col]
    if use_mask:
        # Known rows (mask == 1) contribute to the CE; incremental rows contribute 0
        # (fuzzy_loss is 0.0 in the reference's incremental branch).
        mask_col = jnp.logical_not(incremental_mask).astype(jnp.float32).reshape(B, 1)
        inputs.append(mask_col)
        count = jnp.sum(mask_col)
    else:
        count = jnp.float32(B)   # non-incremental: every row counts; no mask DMA/multiply

    partial_sums, pred = _ce_pallas(inputs, B, C, tb, use_mask,
                                    vmem_limit=vmem_cap * 5 // 8)

    masked_sum = jnp.sum(partial_sums)        # num_tiles scalars — trivial wrapper reduce
    loss_known = jnp.where(count > 0.0,
                           masked_sum / jnp.maximum(count, 1.0),
                           jnp.float32(0.0))
    fuzzy_loss = jnp.float32(0.0)             # dead branch in the reference forward()
    total_loss = loss_known + jnp.float32(lambda_fuzzy) * fuzzy_loss
    return total_loss, pred[:, 0]
    # TODO(synk): fuzzy_guide_loss is never invoked by forward() in the reference
    # (its result is discarded), so it is intentionally not ported to the kernel.


if __name__ == "__main__":
    key = jax.random.PRNGKey(0)
    k1, k2, k3, k4, k5, k6 = jax.random.split(key, 6)

    def reference(lg, tg, inc, is_inc):
        lg = lg.astype(jnp.float32)
        logp = jax.nn.log_softmax(lg, axis=1)
        nll = -jnp.take_along_axis(logp, tg[:, None].astype(jnp.int32), axis=1)[:, 0]
        m = jnp.logical_not(inc).astype(jnp.float32) if is_inc else jnp.ones_like(nll)
        cnt = m.sum()
        loss = jnp.where(cnt > 0, (nll * m).sum() / jnp.maximum(cnt, 1.0), 0.0)
        return loss, jnp.argmax(lg, axis=1)

    # --- config 1: small f32, both forward paths, single-tile grid ---------------------
    B, C = 8, 32
    logits = jax.random.normal(k1, (B, C), dtype=jnp.float32)
    target = jax.random.randint(k2, (B,), 0, C, dtype=jnp.int32)
    inc_mask = jax.random.bernoulli(k3, 0.5, (B,))

    loss0, pred0 = student_incremental_ce_loss(logits, target, inc_mask, is_incremental=False)
    loss1, pred1 = student_incremental_ce_loss(logits, target, inc_mask, is_incremental=True)
    jax.block_until_ready((loss0, pred0, loss1, pred1))

    ref0, refp = reference(logits, target, inc_mask, False)
    ref1, _ = reference(logits, target, inc_mask, True)
    assert jnp.allclose(loss0, ref0, atol=1e-5), (loss0, ref0)
    assert jnp.allclose(loss1, ref1, atol=1e-5), (loss1, ref1)
    assert jnp.array_equal(pred0, refp)
    assert jnp.array_equal(pred1, refp)

    # --- config 2: bf16 ingestion (logits stay bf16 through the HBM DMA) ---------------
    logits_bf16 = logits.astype(jnp.bfloat16)
    loss_bf, pred_bf = student_incremental_ce_loss(logits_bf16, target, inc_mask,
                                                   is_incremental=False)
    jax.block_until_ready((loss_bf, pred_bf))
    ref_bf, refp_bf = reference(logits_bf16, target, inc_mask, False)
    assert jnp.allclose(loss_bf, ref_bf, atol=1e-5), (loss_bf, ref_bf)
    assert jnp.array_equal(pred_bf, refp_bf)

    # --- config 3: multi-tile grid with a ragged (partial) tail tile, incremental ------
    B2 = 40
    logits2 = jax.random.normal(k4, (B2, C), dtype=jnp.float32)
    target2 = jax.random.randint(k5, (B2,), 0, C, dtype=jnp.int32)
    inc2 = jax.random.bernoulli(k6, 0.5, (B2,))
    loss2, pred2 = student_incremental_ce_loss(logits2, target2, inc2,
                                               is_incremental=True, tile_rows=16)
    jax.block_until_ready((loss2, pred2))
    ref2, refp2 = reference(logits2, target2, inc2, True)
    assert jnp.allclose(loss2, ref2, atol=1e-5), (loss2, ref2)
    assert jnp.array_equal(pred2, refp2)

    # --- config 4: bf16, multi-tile with ragged tail, non-incremental (no mask DMA) ----
    logits3 = logits2.astype(jnp.bfloat16)
    loss3, pred3 = student_incremental_ce_loss(logits3, target2, inc2,
                                               is_incremental=False)
    jax.block_until_ready((loss3, pred3))
    ref3, refp3 = reference(logits3, target2, inc2, False)
    assert jnp.allclose(loss3, ref3, atol=1e-5), (loss3, ref3)
    assert jnp.array_equal(pred3, refp3)

    print("KERNEL_OK")
</pallas_src>

<mosaic_0001>
module attributes {stable_mosaic.version = 11 : i64} {
  func.func @kernel(%arg0: i32, %arg1: memref<8x32xf32, #tpu.memory_space<vmem>>, %arg2: memref<8x1xi32, #tpu.memory_space<vmem>>, %arg3: memref<1x1xf32, #tpu.memory_space<vmem>>, %arg4: memref<8x1xi32, #tpu.memory_space<vmem>>) attributes {dimension_semantics = [#tpu.dimension_semantics<parallel>], iteration_bounds = array<i64: 1>, scalar_prefetch = 0 : i64, scratch_operands = 0 : i64, tpu.core_type = #tpu.core_type<tc>, window_params = [{transform_indices = @transform_0, window_bounds = array<i64: 8, 32>}, {transform_indices = @transform_1, window_bounds = array<i64: 8, 1>}, {transform_indices = @transform_2, window_bounds = array<i64: 1, 1>}, {transform_indices = @transform_3, window_bounds = array<i64: 8, 1>}]} {
    %c0 = arith.constant 0 : index
    %c0_0 = arith.constant 0 : index
    %0 = vector.load %arg1[%c0, %c0_0] : memref<8x32xf32, #tpu.memory_space<vmem>>, vector<8x32xf32>
    %cst = arith.constant dense<0xFF800000> : vector<8xf32>
    %1 = vector.multi_reduction <maximumf>, %0, %cst [1] : vector<8x32xf32> to vector<8xf32>
    %2 = vector.shape_cast %1 : vector<8xf32> to vector<8x1xf32>
    %3 = vector.broadcast %2 : vector<8x1xf32> to vector<8x32xf32>
    %4 = arith.subf %0, %3 : vector<8x32xf32>
    %5 = math.exp %4 : vector<8x32xf32>
    %cst_1 = arith.constant dense<0.000000e+00> : vector<8xf32>
    %6 = vector.multi_reduction <add>, %5, %cst_1 [1] : vector<8x32xf32> to vector<8xf32>
    %7 = vector.shape_cast %6 : vector<8xf32> to vector<8x1xf32>
    %8 = math.log %7 : vector<8x1xf32>
    %9 = tpu.iota {dimensions = array<i32: 1>} : vector<8x32xi32>
    %c0_2 = arith.constant 0 : index
    %c0_3 = arith.constant 0 : index
    %10 = vector.load %arg2[%c0_2, %c0_3] : memref<8x1xi32, #tpu.memory_space<vmem>>, vector<8x1xi32>
    %11 = vector.broadcast %10 : vector<8x1xi32> to vector<8x32xi32>
    %12 = arith.cmpi eq, %9, %11 : vector<8x32xi32>
    %cst_4 = arith.constant 0.000000e+00 : f32
    %13 = vector.broadcast %cst_4 : f32 to vector<8x32xf32>
    %14 = arith.select %12, %4, %13 : vector<8x32xi1>, vector<8x32xf32>
    %cst_5 = arith.constant dense<0.000000e+00> : vector<8xf32>
    %15 = vector.multi_reduction <add>, %14, %cst_5 [1] : vector<8x32xf32> to vector<8xf32>
    %16 = vector.shape_cast %15 : vector<8xf32> to vector<8x1xf32>
    %17 = arith.subf %8, %16 : vector<8x1xf32>
    %c8_i32 = arith.constant 8 : i32
    %18 = arith.muli %arg0, %c8_i32 : i32
    %19 = tpu.iota {dimensions = array<i32: 0>} : vector<8x1xi32>
    %20 = vector.broadcast %18 : i32 to vector<8x1xi32>
    %21 = arith.addi %20, %19 : vector<8x1xi32>
    %c8_i32_6 = arith.constant 8 : i32
    %22 = vector.broadcast %c8_i32_6 : i32 to vector<8x1xi32>
    %23 = arith.cmpi slt, %21, %22 : vector<8x1xi32>
    %cst_7 = arith.constant 0.000000e+00 : f32
    %24 = vector.broadcast %cst_7 : f32 to vector<8x1xf32>
    %25 = arith.select %23, %17, %24 : vector<8x1xi1>, vector<8x1xf32>
    %26 = vector.shape_cast %25 : vector<8x1xf32> to vector<1x8x1xf32>
    %cst_8 = arith.constant dense<0.000000e+00> : vector<1xf32>
    %27 = vector.multi_reduction <add>, %26, %cst_8 [1, 2] : vector<1x8x1xf32> to vector<1xf32>
    %28 = vector.shape_cast %27 : vector<1xf32> to vector<1x1x1xf32>
    %29 = vector.extract %28[0, 0, 0] : f32 from vector<1x1x1xf32>
    %30 = vector.broadcast %29 : f32 to vector<1x1xf32>
    %c0_9 = arith.constant 0 : index
    %c0_10 = arith.constant 0 : index
    %31 = vector.load %arg3[%c0_9, %c0_10] : memref<1x1xf32, #tpu.memory_space<vmem>>, vector<1x1xf32>
    tpu.vector_store %arg3[%c0_9, %c0_10], %30 {strides = array<i32>} : memref<1x1xf32, #tpu.memory_space<vmem>>, vector<1x1xf32>,
    %cst_11 = arith.constant 0.000000e+00 : f32
    %32 = vector.broadcast %cst_11 : f32 to vector<8x32xf32>
    %33 = arith.cmpf oeq, %4, %32 : vector<8x32xf32>
    %c32_i32 = arith.constant 32 : i32
    %34 = vector.broadcast %c32_i32 : i32 to vector<8x32xi32>
    %35 = arith.select %33, %9, %34 : vector<8x32xi1>, vector<8x32xi32>
    %cst_12 = arith.constant dense<2147483647> : vector<8xi32>
    %36 = vector.multi_reduction <minsi>, %35, %cst_12 [1] : vector<8x32xi32> to vector<8xi32>
    %37 = vector.shape_cast %36 : vector<8xi32> to vector<8x1xi32>
    %c0_13 = arith.constant 0 : index
    %c0_14 = arith.constant 0 : index
    %38 = vector.load %arg4[%c0_13, %c0_14] : memref<8x1xi32, #tpu.memory_space<vmem>>, vector<8x1xi32>
    tpu.vector_store %arg4[%c0_13, %c0_14], %37 {strides = array<i32>} : memref<8x1xi32, #tpu.memory_space<vmem>>, vector<8x1xi32>,
    return
  }
  func.func @transform_0(%arg0: i32) -> (i32, i32) {
    %c0_i32 = arith.constant 0 : i32
    %c0_i32_0 = arith.constant 0 : i32
    return %arg0, %c0_i32 : i32, i32
  }
  func.func @transform_1(%arg0: i32) -> (i32, i32) {
    %c0_i32 = arith.constant 0 : i32
    %c0_i32_0 = arith.constant 0 : i32
    return %arg0, %c0_i32 : i32, i32
  }
  func.func @transform_2(%arg0: i32) -> (i32, i32) {
    %c0_i32 = arith.constant 0 : i32
    %c0_i32_0 = arith.constant 0 : i32
    return %arg0, %c0_i32 : i32, i32
  }
  func.func @transform_3(%arg0: i32) -> (i32, i32) {
    %c0_i32 = arith.constant 0 : i32
    %c0_i32_0 = arith.constant 0 : i32
    return %arg0, %c0_i32 : i32, i32
  }
}

</mosaic_0001>

<llo_original>
// kernel: student_incremental_ce_loss.1
$region0: #{student_incremental_ce_loss.1}
  #allocation0 [shape = 'u32[]', space=smem, size = 0x4, offset = 0x4, fixed_abs, tag = 'smem constant byte address 0x4 - core index']
  #allocation1 [shape = 'u32[144,128]{1,0:T(1,128)}', space=vmem, size = 0x12000, scoped, tag = 'internal scratch']
  %s0 = inlined_call_operand.vmem [shape: f32[8,32], index: 0, kind: input, shape index: {}]
  %s1 = inlined_call_operand.vmem [shape: s32[8,1], index: 1, kind: input, shape index: {}]
  %s2 = inlined_call_operand.hbm [shape: f32[1,1], index: 2, kind: output, shape index: {0}]
  %s3 = inlined_call_operand.vmem [shape: s32[8,1], index: 3, kind: output, shape index: {1}]
  %4 = xla_tuple %s2, %s3
  %s5 = sld [smem:[#allocation0]]
  $region26: #{student_incremental_ce_loss.1} parent=0
    _
  %s7 = ssub.s32 1, %s5
  %s8 = scalar_select 0, %s7, %s5
  $region1: #{student_incremental_ce_loss.1} parent=0
    #allocation2 [shape = 'u8[512]{0}', space=vmem, size = 0x400, scoped, tag = 'output window, operand 0, single buffered']
    #allocation3 [shape = 's32[1]{0}', space=sflag, size = 0x4, scoped, tag = 'scoped memory for student_incremental_ce_loss.1']
    %9 = vsyncpa [#allocation3], 0
    // Predicated region
    $region2: #{student_incremental_ce_loss.1} parent=1 // pred_check
      _
    $region3: #{student_incremental_ce_loss.1} parent=1 // pred_check_branch
      %11 = sbr.rel (0) target = $region5
    $region4: #{student_incremental_ce_loss.1} parent=1 // pred_region
      _
    $region5: #{student_incremental_ce_loss.1} parent=1 // pred_fallthru
      _
    // Predicated region
    $region6: #{student_incremental_ce_loss.1} parent=1 // pred_check
      _
    $region7: #{student_incremental_ce_loss.1} parent=1 // pred_check_branch
      %13 = sbr.rel (0) target = $region9
    $region8: #{student_incremental_ce_loss.1} parent=1 // pred_region
      _
    $region9: #{student_incremental_ce_loss.1} parent=1 // pred_fallthru
      _
    %v14 = vld [vmem:[%s0] sm:$0xff]
    %vm15 = vcmask 261120
    %v16 = vsel %vm15, %v14, -inf
    %17 = vmax.xlane.f32.xlu0 %v16
    %v18 = vpop.xlane.xlu0 %17
    %v19 = vsub.f32 %v14, %v18
    %v20 = vmul.f32 %v19, 1.442695
    %v21 = vpow.pop %v20
    %v22 = vsel %vm15, %v21, 0.0
    %23 = vadd.xlane.f32.xlu0 %v22
    %v24 = vpop.xlane.xlu0 %23
    %v25 = vlog2.pop %v24
    %v26 = vmul.f32 %v25, 0.6931472
    %v27 = vlaneseq
    %v28 = vand.u32 %v27, 127
    %v29 = vld [vmem:[%s1] sm:$0xff]
    %30 = vset.pattern.permute.xlu0 0
    %31 = vperm.xlu0 %30, %v29
    %v32 = vpop.permute.xlu0 %31
    %vm33 = vcmp.eq.s32.totalorder %v28, %v32
    %v34 = vsel %vm33, %v19, 0.0
    %v35 = vsel %vm15, %v34, 0.0
    %36 = vadd.xlane.f32.xlu0 %v35
    %v37 = vpop.xlane.xlu0 %36
    %v38 = vsub.f32 %v26, %v37
    %s39 = smul.u32 0, 8
    %v40 = vlaneseq
    %v41 = vshrl.u32 %v40, 7
    %v42 = vstv %s39
    %v43 = vadd.s32 %v42, %v41
    %vm44 = vcmp.lt.s32.totalorder %v43, 8
    %v45 = vsel %vm44, %v38, 0.0
    %vm46 = vcmask 7168
    %v47 = vsel %vm46, %v45, 0.0
    %48 = vadd.xlane.f32.xlu0 %v47
    %v49 = vpop.xlane.xlu0 %48
    %v50 = vrot.slane %v49, 4
    %v51 = vadd.f32 %v49, %v50
    %v52 = vrot.slane %v51, 2
    %v53 = vadd.f32 %v51, %v52
    %v54 = vrot.slane %v53, 1
    %v55 = vadd.f32 %v53, %v54
    %s56 = vtos %v55
    %v57 = vstv %s56
    %vm58 = vcmask 0
    %59 = vst.msk [vmem:[#allocation2] sm:$0x1] %vm58, %v57
    %vm60 = vcmp.eq.f32.partialorder %v19, 0.0
    %v61 = vsel %vm60, %v28, 32
    %v62 = vsel %vm15, %v61, 2147483647
    %v63 = vand.u32 %v62, 65535
    %v64 = vshra.s32 %v62, 16
    %v65 = vcvt.s32.f32 %v63
    %v66 = vcvt.s32.f32 %v64
    %67 = vmin.xlane.f32.xlu0 %v66
    %v68 = vpop.xlane.xlu0 %67
    %vm69 = vcmp.eq.f32.partialorder %v66, %v68
    %v70 = vsel %vm69, %v65, inf
    %71 = vmin.xlane.f32.xlu0 %v70
    %v72 = vpop.xlane.xlu0 %71
    %v73 = vcvt.f32.s32 %v72
    %v74 = vcvt.f32.s32 %v68
    %v75 = vshll.u32 %v74, 16
    %v76 = vadd.s32 %v75, %v73
    %77 = vst.msk [vmem:[%s3] sm:$0xff] %vm46, %v76
    // Predicated region
    $region10: #{student_incremental_ce_loss.1} parent=1 // pred_check
      _
    $region11: #{student_incremental_ce_loss.1} parent=1 // pred_check_branch
      %79 = sbr.rel (0) target = $region13
    $region12: #{student_incremental_ce_loss.1} parent=1 // pred_region
      %s81 = ssub.s32 16, 16
      %82 = vsyncadd [#allocation3], %s81
      %s84 = sshll.u32 [#allocation2], 4
      %s85 = int_to_ptr.vmem [resolvable:$true] %s84
      %87 = dma.vmem_to_hbm [thread:$0]  %s85, 16, %s2, [#allocation3]
    $region13: #{student_incremental_ce_loss.1} parent=1 // pred_fallthru
      _
    // Predicated region
    $region14: #{student_incremental_ce_loss.1} parent=1 // pred_check
      _
    $region15: #{student_incremental_ce_loss.1} parent=1 // pred_check_branch
      %89 = sbr.rel (0) target = $region17
    $region16: #{student_incremental_ce_loss.1} parent=1 // pred_region
      _
    $region17: #{student_incremental_ce_loss.1} parent=1 // pred_fallthru
      _
    // Predicated region
    $region18: #{student_incremental_ce_loss.1} parent=1 // pred_check
      _
    $region19: #{student_incremental_ce_loss.1} parent=1 // pred_check_branch
      %91 = sbr.rel (0) target = $region21
    $region20: #{student_incremental_ce_loss.1} parent=1 // pred_region
      %92 = dma.done [#allocation3], 16
    $region21: #{student_incremental_ce_loss.1} parent=1 // pred_fallthru
      _
    // Predicated region
    $region22: #{student_incremental_ce_loss.1} parent=1 // pred_check
      _
    $region23: #{student_incremental_ce_loss.1} parent=1 // pred_check_branch
      %94 = sbr.rel (0) target = $region25
    $region24: #{student_incremental_ce_loss.1} parent=1 // pred_region
      _
    $region25: #{student_incremental_ce_loss.1} parent=1 // pred_fallthru
      _
    %95 = vsyncpa [#allocation3], 1

</llo_original>
